<compile_context>
chip_gen: v7x
topology: tpu7x:2x2x1
jax: 0.10.0
libtpu: 0.0.40
codegen_flags: <defaults>
</compile_context>

<pallas_src>
import jax
import jax.numpy as jnp
from jax import lax
from jax.experimental import pallas as pl
from jax.experimental.pallas import tpu as pltpu


# ---------------------------------------------------------------------------
# Pass 1: reductions + normalization + both Linear layers (+offset, clip).
# Runs once; tiny (B, L) outputs, so no per-tile recomputation in pass 2.
# ---------------------------------------------------------------------------
def _gridfc_index_kernel(attx_ref, atty_ref, wxt_ref, offx_ref, wyt_ref,
                         offy_ref, ix_ref, iy_ref):
    # ---- x path: max over W (sublane reduction), normalize, GEMV, clip ----
    ax = jnp.max(attx_ref[...], axis=1)                              # (B, L)
    ax = ax / jnp.sum(ax, axis=1, keepdims=True)
    ix = jnp.dot(ax, wxt_ref[...], preferred_element_type=jnp.float32)
    ix_ref[...] = jnp.clip(ix + offx_ref[...], -1.0, 1.0)            # (B, L)

    # ---- y path: max over H (sublane reduction), normalize, GEMV, clip ----
    ay = jnp.max(atty_ref[...], axis=1)                              # (B, L)
    ay = ay / jnp.sum(ay, axis=1, keepdims=True)
    iy = jnp.dot(ay, wyt_ref[...], preferred_element_type=jnp.float32)
    iy_ref[...] = jnp.clip(iy + offy_ref[...], -1.0, 1.0)            # (B, L)


# ---------------------------------------------------------------------------
# Pass 2: pure broadcast writer.  One where-select and one full-width store
# per grid step; even lanes carry grid_x, odd lanes carry grid_y.
# ---------------------------------------------------------------------------
def _gridfc_writer_kernel(ix2_ref, iy_ref, out_ref):
    two_l = out_ref.shape[-1]
    lane = lax.broadcasted_iota(jnp.int32, (1, 1, two_l), 2)
    odd = (lane & 1) == 1
    # ix2_ref: (B, 1, 2L) with index_x duplicated into each lane pair
    # iy_ref : (B, tile_m, 1) block of index_y (rows on the sublane axis)
    out_ref[...] = jnp.where(odd, iy_ref[...], ix2_ref[...]).astype(out_ref.dtype)


def _pick_tile_m(L, B, two_l, max_tile=256, bytes_budget=24 * 1024 * 1024):
    """Largest multiple-of-8 divisor of L that is <= min(max_tile, L//2) and
    keeps the double-buffered f32 output block under the byte budget.
    Falls back to L (single step) when no such divisor exists."""
    target = min(max_tile, L // 2) if L >= 16 else L
    while target > 8 and 2 * B * target * two_l * 4 > bytes_budget:
        target //= 2
    for d in range(max(target, 1), 7, -1):
        if L % d == 0 and d % 8 == 0:
            return d
    return L


def gridfc_forward(att, params, *, out_dtype=jnp.float32, tile_m=None):
    B, C, H, W = att.shape
    x_len, y_len = C * H, C * W
    assert x_len == y_len, "torch.cat along dim 3 requires x_len == y_len"
    L = x_len
    two_l = 2 * L

    att = att.astype(jnp.float32)
    # lane-dense views: both maxes become sublane reductions inside the kernel
    att_x_view = jnp.transpose(att, (0, 3, 1, 2)).reshape(B, W, x_len)  # max over W
    att_y_view = jnp.transpose(att, (0, 2, 1, 3)).reshape(B, H, y_len)  # max over H

    wxT = params["wx"].T.astype(jnp.float32)                            # (in, out)
    wyT = params["wy"].T.astype(jnp.float32)
    offx = (params["bx"] + params["identity_x"]).astype(jnp.float32).reshape(1, x_len)
    offy = (params["by"] + params["identity_y"]).astype(jnp.float32).reshape(1, y_len)

    def full(shape):
        return pl.BlockSpec(shape, lambda *_: (0,) * len(shape))

    # ---------------- pass 1: index_x / index_y (computed once) -------------
    ix, iy = pl.pallas_call(
        _gridfc_index_kernel,
        out_shape=(jax.ShapeDtypeStruct((B, x_len), jnp.float32),
                   jax.ShapeDtypeStruct((B, y_len), jnp.float32)),
        grid=(1,),
        in_specs=[full((B, W, x_len)), full((B, H, y_len)),
                  full((x_len, x_len)), full((1, x_len)),
                  full((y_len, y_len)), full((1, y_len))],
        out_specs=(full((B, x_len)), full((B, y_len))),
        compiler_params=pltpu.CompilerParams(
            dimension_semantics=("arbitrary",),
            vmem_limit_bytes=48 * 1024 * 1024),
    )(att_x_view, att_y_view, wxT, offx, wyT, offy)

    # O(B*L) prep for the writer (cheap XLA ops, no big weight slab needed):
    #   * index_x duplicated into lane pairs -> lands on the even lanes
    #   * index_y with L on the sublane axis -> native lane broadcast in-kernel
    ix2 = jnp.stack([ix, ix], axis=-1).reshape(B, 1, two_l)
    iy3 = iy.reshape(B, L, 1)

    # ---------------- pass 2: broadcast writer, row-tiled, parallel ----------
    if tile_m is None:
        tile_m = _pick_tile_m(L, B, two_l)
    assert L % tile_m == 0
    m_tiles = L // tile_m

    out = pl.pallas_call(
        _gridfc_writer_kernel,
        out_shape=jax.ShapeDtypeStruct((B, L, two_l), out_dtype),
        grid=(m_tiles,),
        in_specs=[
            pl.BlockSpec((B, 1, two_l), lambda m: (0, 0, 0)),
            pl.BlockSpec((B, tile_m, 1), lambda m: (0, m, 0)),
        ],
        out_specs=pl.BlockSpec((B, tile_m, two_l), lambda m: (0, m, 0)),
        compiler_params=pltpu.CompilerParams(
            dimension_semantics=("parallel",),
            vmem_limit_bytes=48 * 1024 * 1024),
    )(ix2, iy3)

    # contiguous metadata-only reshape: even lanes -> grid_x, odd -> grid_y,
    # i.e. exactly torch.cat([grid_x, grid_y], dim=3)
    return out.reshape(B, L, L, 2)


def init_params(key, x_len, y_len):
    # deterministic, mimics init_weight(): xavier_normal_ weights, zero bias
    kx, ky = jax.random.split(key)
    std_x = (2.0 / (x_len + x_len)) ** 0.5
    std_y = (2.0 / (y_len + y_len)) ** 0.5
    wx = std_x * jax.random.normal(kx, (x_len, x_len), jnp.float32)  # (out, in)
    wy = std_y * jax.random.normal(ky, (y_len, y_len), jnp.float32)  # (out, in)
    bx = jnp.zeros((x_len,), jnp.float32)
    by = jnp.zeros((y_len,), jnp.float32)
    identity_x = jnp.arange(x_len, dtype=jnp.float32) * (2.0 / (x_len - 1)) - 1.0
    identity_y = jnp.arange(y_len, dtype=jnp.float32) * (2.0 / (y_len - 1)) - 1.0
    return dict(wx=wx, bx=bx, wy=wy, by=by,
                identity_x=identity_x, identity_y=identity_y)


def gridfc_reference(att, params):
    # pure-JAX transcription of the PyTorch forward, for validation
    B, C, H, W = att.shape
    x_len, y_len = C * H, C * W
    map_sx = jnp.max(att, axis=3, keepdims=True)                 # (B,C,H,1)
    map_sy = jnp.max(att, axis=2, keepdims=True)                 # (B,C,1,W)
    sum_sx = jnp.sum(map_sx, axis=(1, 2), keepdims=True)
    sum_sy = jnp.sum(map_sy, axis=(1, 3), keepdims=True)
    att_x = (map_sx / sum_sx).reshape(B, x_len)
    att_y = (map_sy / sum_sy).reshape(B, y_len)
    index_x = att_x @ params["wx"].T + params["bx"]
    index_y = att_y @ params["wy"].T + params["by"]
    index_x = jnp.clip(index_x + params["identity_x"][None, :], -1.0, 1.0)
    index_y = jnp.clip(index_y + params["identity_y"][None, :], -1.0, 1.0)
    grid_x = jnp.broadcast_to(index_x[:, None, :], (B, x_len, x_len))
    grid_y = jnp.broadcast_to(index_y[:, :, None], (B, y_len, y_len))
    return jnp.stack([grid_x, grid_y], axis=-1)


if __name__ == "__main__":
    key = jax.random.PRNGKey(0)
    k_att, k_par = jax.random.split(key)

    B, C, H, W = 2, 4, 16, 16                # x_len = y_len = 64
    att = jax.random.uniform(k_att, (B, C, H, W), dtype=jnp.float32)
    params = init_params(k_par, C * H, C * W)

    out = gridfc_forward(att, params)        # f32 output for the 1e-4 check
    out = jax.block_until_ready(out)

    ref = gridfc_reference(att, params)
    assert out.shape == (B, C * H, C * W, 2), out.shape
    assert jnp.allclose(out, ref, atol=1e-4, rtol=1e-4), \
        float(jnp.max(jnp.abs(out - ref)))
    print("KERNEL_OK")
</pallas_src>

<mosaic_0001>
module attributes {stable_mosaic.version = 11 : i64} {
  func.func @_gridfc_index_kernel(%arg0: i32, %arg1: memref<2x16x64xf32, #tpu.memory_space<vmem>>, %arg2: memref<2x16x64xf32, #tpu.memory_space<vmem>>, %arg3: memref<64x64xf32, #tpu.memory_space<vmem>>, %arg4: memref<1x64xf32, #tpu.memory_space<vmem>>, %arg5: memref<64x64xf32, #tpu.memory_space<vmem>>, %arg6: memref<1x64xf32, #tpu.memory_space<vmem>>, %arg7: memref<2x64xf32, #tpu.memory_space<vmem>>, %arg8: memref<2x64xf32, #tpu.memory_space<vmem>>) attributes {dimension_semantics = [#tpu.dimension_semantics<arbitrary>], iteration_bounds = array<i64: 1>, scalar_prefetch = 0 : i64, scratch_operands = 0 : i64, tpu.core_type = #tpu.core_type<tc>, window_params = [{pipeline_mode = #tpu.pipeline_mode<synchronous>, transform_indices = @transform_0, window_bounds = array<i64: 2, 16, 64>}, {pipeline_mode = #tpu.pipeline_mode<synchronous>, transform_indices = @transform_1, window_bounds = array<i64: 2, 16, 64>}, {pipeline_mode = #tpu.pipeline_mode<synchronous>, transform_indices = @transform_2, window_bounds = array<i64: 64, 64>}, {pipeline_mode = #tpu.pipeline_mode<synchronous>, transform_indices = @transform_3, window_bounds = array<i64: 1, 64>}, {pipeline_mode = #tpu.pipeline_mode<synchronous>, transform_indices = @transform_4, window_bounds = array<i64: 64, 64>}, {pipeline_mode = #tpu.pipeline_mode<synchronous>, transform_indices = @transform_5, window_bounds = array<i64: 1, 64>}, {pipeline_mode = #tpu.pipeline_mode<synchronous>, transform_indices = @transform_6, window_bounds = array<i64: 2, 64>}, {pipeline_mode = #tpu.pipeline_mode<synchronous>, transform_indices = @transform_7, window_bounds = array<i64: 2, 64>}]} {
    %c0 = arith.constant 0 : index
    %c0_0 = arith.constant 0 : index
    %c0_1 = arith.constant 0 : index
    %0 = vector.load %arg1[%c0, %c0_0, %c0_1] : memref<2x16x64xf32, #tpu.memory_space<vmem>>, vector<2x16x64xf32>
    %cst = arith.constant dense<0xFF800000> : vector<2x64xf32>
    %1 = vector.multi_reduction <maximumf>, %0, %cst [1] : vector<2x16x64xf32> to vector<2x64xf32>
    %cst_2 = arith.constant dense<0.000000e+00> : vector<2xf32>
    %2 = vector.multi_reduction <add>, %1, %cst_2 [1] : vector<2x64xf32> to vector<2xf32>
    %3 = vector.shape_cast %2 : vector<2xf32> to vector<2x1xf32>
    %4 = vector.broadcast %3 : vector<2x1xf32> to vector<2x64xf32>
    %5 = arith.divf %1, %4 : vector<2x64xf32>
    %c0_3 = arith.constant 0 : index
    %c0_4 = arith.constant 0 : index
    %6 = vector.load %arg3[%c0_3, %c0_4] : memref<64x64xf32, #tpu.memory_space<vmem>>, vector<64x64xf32>
    %cst_5 = arith.constant dense<0.000000e+00> : vector<2x64xf32>
    %7 = tpu.matmul %5, %6, %cst_5 {dimension_numbers = #tpu.dot_dimension_numbers<[1], [0], [0], [1], [0, 0, 1, 1], [], []>} : vector<2x64xf32>, vector<64x64xf32>, vector<2x64xf32> -> vector<2x64xf32>
    %c0_6 = arith.constant 0 : index
    %c0_7 = arith.constant 0 : index
    %8 = vector.load %arg4[%c0_6, %c0_7] : memref<1x64xf32, #tpu.memory_space<vmem>>, vector<1x64xf32>
    %9 = vector.broadcast %8 : vector<1x64xf32> to vector<2x64xf32>
    %10 = arith.addf %7, %9 : vector<2x64xf32>
    %cst_8 = arith.constant -1.000000e+00 : f32
    %cst_9 = arith.constant 1.000000e+00 : f32
    %11 = vector.broadcast %cst_8 : f32 to vector<2x64xf32>
    %12 = arith.maximumf %11, %10 : vector<2x64xf32>
    %13 = vector.broadcast %cst_9 : f32 to vector<2x64xf32>
    %14 = arith.minimumf %13, %12 : vector<2x64xf32>
    %c0_10 = arith.constant 0 : index
    %c0_11 = arith.constant 0 : index
    %15 = vector.load %arg7[%c0_10, %c0_11] : memref<2x64xf32, #tpu.memory_space<vmem>>, vector<2x64xf32>
    tpu.vector_store %arg7[%c0_10, %c0_11], %14 {strides = array<i32>} : memref<2x64xf32, #tpu.memory_space<vmem>>, vector<2x64xf32>,
    %c0_12 = arith.constant 0 : index
    %c0_13 = arith.constant 0 : index
    %c0_14 = arith.constant 0 : index
    %16 = vector.load %arg2[%c0_12, %c0_13, %c0_14] : memref<2x16x64xf32, #tpu.memory_space<vmem>>, vector<2x16x64xf32>
    %cst_15 = arith.constant dense<0xFF800000> : vector<2x64xf32>
    %17 = vector.multi_reduction <maximumf>, %16, %cst_15 [1] : vector<2x16x64xf32> to vector<2x64xf32>
    %cst_16 = arith.constant dense<0.000000e+00> : vector<2xf32>
    %18 = vector.multi_reduction <add>, %17, %cst_16 [1] : vector<2x64xf32> to vector<2xf32>
    %19 = vector.shape_cast %18 : vector<2xf32> to vector<2x1xf32>
    %20 = vector.broadcast %19 : vector<2x1xf32> to vector<2x64xf32>
    %21 = arith.divf %17, %20 : vector<2x64xf32>
    %c0_17 = arith.constant 0 : index
    %c0_18 = arith.constant 0 : index
    %22 = vector.load %arg5[%c0_17, %c0_18] : memref<64x64xf32, #tpu.memory_space<vmem>>, vector<64x64xf32>
    %cst_19 = arith.constant dense<0.000000e+00> : vector<2x64xf32>
    %23 = tpu.matmul %21, %22, %cst_19 {dimension_numbers = #tpu.dot_dimension_numbers<[1], [0], [0], [1], [0, 0, 1, 1], [], []>} : vector<2x64xf32>, vector<64x64xf32>, vector<2x64xf32> -> vector<2x64xf32>
    %c0_20 = arith.constant 0 : index
    %c0_21 = arith.constant 0 : index
    %24 = vector.load %arg6[%c0_20, %c0_21] : memref<1x64xf32, #tpu.memory_space<vmem>>, vector<1x64xf32>
    %25 = vector.broadcast %24 : vector<1x64xf32> to vector<2x64xf32>
    %26 = arith.addf %23, %25 : vector<2x64xf32>
    %cst_22 = arith.constant -1.000000e+00 : f32
    %cst_23 = arith.constant 1.000000e+00 : f32
    %27 = vector.broadcast %cst_22 : f32 to vector<2x64xf32>
    %28 = arith.maximumf %27, %26 : vector<2x64xf32>
    %29 = vector.broadcast %cst_23 : f32 to vector<2x64xf32>
    %30 = arith.minimumf %29, %28 : vector<2x64xf32>
    %c0_24 = arith.constant 0 : index
    %c0_25 = arith.constant 0 : index
    %31 = vector.load %arg8[%c0_24, %c0_25] : memref<2x64xf32, #tpu.memory_space<vmem>>, vector<2x64xf32>
    tpu.vector_store %arg8[%c0_24, %c0_25], %30 {strides = array<i32>} : memref<2x64xf32, #tpu.memory_space<vmem>>, vector<2x64xf32>,
    return
  }
  func.func @transform_0(%arg0: i32) -> (i32, i32, i32) {
    %c0_i32 = arith.constant 0 : i32
    %c0_i32_0 = arith.constant 0 : i32
    %c0_i32_1 = arith.constant 0 : i32
    %c0_i32_2 = arith.constant 0 : i32
    return %c0_i32, %c0_i32_0, %c0_i32_1 : i32, i32, i32
  }
  func.func @transform_1(%arg0: i32) -> (i32, i32, i32) {
    %c0_i32 = arith.constant 0 : i32
    %c0_i32_0 = arith.constant 0 : i32
    %c0_i32_1 = arith.constant 0 : i32
    %c0_i32_2 = arith.constant 0 : i32
    return %c0_i32, %c0_i32_0, %c0_i32_1 : i32, i32, i32
  }
  func.func @transform_2(%arg0: i32) -> (i32, i32) {
    %c0_i32 = arith.constant 0 : i32
    %c0_i32_0 = arith.constant 0 : i32
    %c0_i32_1 = arith.constant 0 : i32
    return %c0_i32, %c0_i32_0 : i32, i32
  }
  func.func @transform_3(%arg0: i32) -> (i32, i32) {
    %c0_i32 = arith.constant 0 : i32
    %c0_i32_0 = arith.constant 0 : i32
    %c0_i32_1 = arith.constant 0 : i32
    return %c0_i32, %c0_i32_0 : i32, i32
  }
  func.func @transform_4(%arg0: i32) -> (i32, i32) {
    %c0_i32 = arith.constant 0 : i32
    %c0_i32_0 = arith.constant 0 : i32
    %c0_i32_1 = arith.constant 0 : i32
    return %c0_i32, %c0_i32_0 : i32, i32
  }
  func.func @transform_5(%arg0: i32) -> (i32, i32) {
    %c0_i32 = arith.constant 0 : i32
    %c0_i32_0 = arith.constant 0 : i32
    %c0_i32_1 = arith.constant 0 : i32
    return %c0_i32, %c0_i32_0 : i32, i32
  }
  func.func @transform_6(%arg0: i32) -> (i32, i32) {
    %c0_i32 = arith.constant 0 : i32
    %c0_i32_0 = arith.constant 0 : i32
    %c0_i32_1 = arith.constant 0 : i32
    return %c0_i32, %c0_i32_0 : i32, i32
  }
  func.func @transform_7(%arg0: i32) -> (i32, i32) {
    %c0_i32 = arith.constant 0 : i32
    %c0_i32_0 = arith.constant 0 : i32
    %c0_i32_1 = arith.constant 0 : i32
    return %c0_i32, %c0_i32_0 : i32, i32
  }
}

</mosaic_0001>

<llo_original>
// kernel: tpu_custom_call.1
$region0: #{tpu_custom_call.1}
  #allocation0 [shape = 'u32[]', space=smem, size = 0x4, offset = 0x4, fixed_abs, tag = 'smem constant byte address 0x4 - core index']
  #allocation1 [shape = 'u32[144,128]{1,0:T(1,128)}', space=vmem, size = 0x12000, scoped, tag = 'internal scratch']
  %s0 = inlined_call_operand.hbm [shape: f32[2,16,64], index: 0, kind: input, shape index: {}]
  %s1 = inlined_call_operand.hbm [shape: f32[2,16,64], index: 1, kind: input, shape index: {}]
  %s2 = inlined_call_operand.hbm [shape: f32[64,64], index: 2, kind: input, shape index: {}]
  %s3 = inlined_call_operand.vmem [shape: f32[1,64], index: 3, kind: input, shape index: {}]
  %s4 = inlined_call_operand.hbm [shape: f32[64,64], index: 4, kind: input, shape index: {}]
  %s5 = inlined_call_operand.vmem [shape: f32[1,64], index: 5, kind: input, shape index: {}]
  %s6 = inlined_call_operand.hbm [shape: f32[2,64], index: 6, kind: output, shape index: {0}]
  %s7 = inlined_call_operand.hbm [shape: f32[2,64], index: 7, kind: output, shape index: {1}]
  %8 = xla_tuple %s6, %s7
  %s9 = sld [smem:[#allocation0]]
  $region58: #{tpu_custom_call.1} parent=0
    _
  %s11 = ssub.s32 1, %s9
  %s12 = scalar_select 0, %s11, %s9
  $region1: #{tpu_custom_call.1} parent=0
    #allocation2 [shape = 'u8[16384]{0}', space=vmem, size = 0x4000, scoped, tag = 'input window, operand 0, single buffered']
    #allocation3 [shape = 's32[1]{0}', space=sflag, size = 0x4, scoped, tag = 'scoped memory for tpu_custom_call.1']
    #allocation4 [shape = 's32[1]{0}', space=sflag, size = 0x4, scoped, tag = 'scoped memory for tpu_custom_call.1']
    #allocation5 [shape = 'u8[16384]{0}', space=vmem, size = 0x4000, scoped, tag = 'input window, operand 1, single buffered']
    #allocation6 [shape = 's32[1]{0}', space=sflag, size = 0x4, scoped, tag = 'scoped memory for tpu_custom_call.1']
    #allocation7 [shape = 'u8[32768]{0}', space=vmem, size = 0x8000, scoped, tag = 'input window, operand 2, single buffered']
    #allocation8 [shape = 'u8[32768]{0}', space=vmem, size = 0x8000, scoped, tag = 'input window, operand 4, single buffered']
    #allocation9 [shape = 's32[1]{0}', space=sflag, size = 0x4, scoped, tag = 'scoped memory for tpu_custom_call.1']
    #allocation10 [shape = 'u8[1024]{0}', space=vmem, size = 0x400, scoped, tag = 'output window, operand 0, single buffered']
    #allocation11 [shape = 'u8[1024]{0}', space=vmem, size = 0x400, scoped, tag = 'output window, operand 1, single buffered']
    #allocation12 [shape = 's32[1]{0}', space=sflag, size = 0x4, scoped, tag = 'scoped memory for tpu_custom_call.1']
    %13 = vsyncpa [#allocation3], 0
    %14 = vsyncpa [#allocation6], 0
    %15 = vsyncpa [#allocation9], 0
    %16 = vsyncpa [#allocation4], 0
    %17 = vsyncpa [#allocation12], 0
    // Predicated region
    $region2: #{tpu_custom_call.1} parent=1 // pred_check
      _
    $region3: #{tpu_custom_call.1} parent=1 // pred_check_branch
      %19 = sbr.rel (0) target = $region5
    $region4: #{tpu_custom_call.1} parent=1 // pred_region
      %s21 = ssub.s32 512, 512
      %22 = vsyncadd [#allocation3], %s21
      %s23 = sshll.u32 [#allocation2], 4
      %s24 = int_to_ptr.vmem [resolvable:$true] %s23
      %29 = dma.hbm_to_vmem [thread:$0]  %s0, 512, %s24, [#allocation3], 128, 128, 8
    $region5: #{tpu_custom_call.1} parent=1 // pred_fallthru
      _
    // Predicated region
    $region6: #{tpu_custom_call.1} parent=1 // pred_check
      _
    $region7: #{tpu_custom_call.1} parent=1 // pred_check_branch
      %31 = sbr.rel (0) target = $region9
    $region8: #{tpu_custom_call.1} parent=1 // pred_region
      %s33 = ssub.s32 512, 512
      %34 = vsyncadd [#allocation6], %s33
      %s35 = sshll.u32 [#allocation5], 4
      %s36 = int_to_ptr.vmem [resolvable:$true] %s35
      %41 = dma.hbm_to_vmem [thread:$0]  %s1, 512, %s36, [#allocation6], 128, 128, 8
    $region9: #{tpu_custom_call.1} parent=1 // pred_fallthru
      _
    // Predicated region
    $region10: #{tpu_custom_call.1} parent=1 // pred_check
      _
    $region11: #{tpu_custom_call.1} parent=1 // pred_check_branch
      %43 = sbr.rel (0) target = $region13
    $region12: #{tpu_custom_call.1} parent=1 // pred_region
      %s45 = ssub.s32 1024, 1024
      %46 = vsyncadd [#allocation6], %s45
      %s47 = sshll.u32 [#allocation7], 4
      %s48 = int_to_ptr.vmem [resolvable:$true] %s47
      %53 = dma.hbm_to_vmem [thread:$0]  %s2, 1024, %s48, [#allocation6], 128, 128, 8
    $region13: #{tpu_custom_call.1} parent=1 // pred_fallthru
      _
    // Predicated region
    $region14: #{tpu_custom_call.1} parent=1 // pred_check
      _
    $region15: #{tpu_custom_call.1} parent=1 // pred_check_branch
      %55 = sbr.rel (0) target = $region17
    $region16: #{tpu_custom_call.1} parent=1 // pred_region
      _
    $region17: #{tpu_custom_call.1} parent=1 // pred_fallthru
      _
    // Predicated region
    $region18: #{tpu_custom_call.1} parent=1 // pred_check
      _
    $region19: #{tpu_custom_call.1} parent=1 // pred_check_branch
      %57 = sbr.rel (0) target = $region21
    $region20: #{tpu_custom_call.1} parent=1 // pred_region
      %s59 = ssub.s32 1024, 1024
      %60 = vsyncadd [#allocation9], %s59
      %s61 = sshll.u32 [#allocation8], 4
      %s62 = int_to_ptr.vmem [resolvable:$true] %s61
      %67 = dma.hbm_to_vmem [thread:$0]  %s4, 1024, %s62, [#allocation9], 128, 128, 8
    $region21: #{tpu_custom_call.1} parent=1 // pred_fallthru
      _
    // Predicated region
    $region22: #{tpu_custom_call.1} parent=1 // pred_check
      _
    $region23: #{tpu_custom_call.1} parent=1 // pred_check_branch
      %69 = sbr.rel (0) target = $region25
    $region24: #{tpu_custom_call.1} parent=1 // pred_region
      _
    $region25: #{tpu_custom_call.1} parent=1 // pred_fallthru
      _
    // Predicated region
    $region26: #{tpu_custom_call.1} parent=1 // pred_check
      _
    $region27: #{tpu_custom_call.1} parent=1 // pred_check_branch
      %71 = sbr.rel (0) target = $region29
    $region28: #{tpu_custom_call.1} parent=1 // pred_region
      %72 = dma.done [#allocation3], 512
    $region29: #{tpu_custom_call.1} parent=1 // pred_fallthru
      _
    // Predicated region
    $region30: #{tpu_custom_call.1} parent=1 // pred_check
      _
    $region31: #{tpu_custom_call.1} parent=1 // pred_check_branch
      %74 = sbr.rel (0) target = $region33
    $region32: #{tpu_custom_call.1} parent=1 // pred_region
      %75 = dma.done [#allocation6], 512
    $region33: #{tpu_custom_call.1} parent=1 // pred_fallthru
      _
    // Predicated region
    $region34: #{tpu_custom_call.1} parent=1 // pred_check
      _
    $region35: #{tpu_custom_call.1} parent=1 // pred_check_branch
      %77 = sbr.rel (0) target = $region37
    $region36: #{tpu_custom_call.1} parent=1 // pred_region
      %78 = dma.done [#allocation6], 1024
    $region37: #{tpu_custom_call.1} parent=1 // pred_fallthru
      _
    // Predicated region
    $region38: #{tpu_custom_call.1} parent=1 // pred_check
      _
    $region39: #{tpu_custom_call.1} parent=1 // pred_check_branch
      %80 = sbr.rel (0) target = $region41
    $region40: #{tpu_custom_call.1} parent=1 // pred_region
      %81 = dma.done [#allocation9], 1024
    $region41: #{tpu_custom_call.1} parent=1 // pred_fallthru
      _
    %v82 = vld [vmem:[#allocation2] sm:$0xff]
    %v83 = vld [vmem:[#allocation2 + $0x8] sm:$0xff]
    %v84 = vld [vmem:[#allocation2 + $0x10] sm:$0xff]
    %v85 = vld [vmem:[#allocation2 + $0x18] sm:$0xff]
    %vm86 = vcmask 523264
    %v87 = vsel %vm86, %v82, -inf
    %v88 = vsel %vm86, %v83, -inf
    %v89 = vmax.f32 %v87, %v88
    %v90 = vrot.slane %v89, 4
    %v91 = vmax.f32 %v89, %v90
    %v92 = vrot.slane %v91, 2
    %v93 = vmax.f32 %v91, %v92
    %v94 = vrot.slane %v93, 1
    %v95 = vmax.f32 %v93, %v94
    %v96 = vsel %vm86, %v84, -inf
    %v97 = vsel %vm86, %v85, -inf
    %v98 = vmax.f32 %v96, %v97
    %v99 = vrot.slane %v98, 4
    %v100 = vmax.f32 %v98, %v99
    %v101 = vrot.slane %v100, 2
    %v102 = vmax.f32 %v100, %v101
    %v103 = vrot.slane %v102, 1
    %v104 = vmax.f32 %v102, %v103
    %vm107 = vcmask 1041409
    %v108 = vsel %vm107, %v104, %v95
    %vm110 = vcmask 517120
    %v111 = vsel %vm110, %v108, 0.0
    %112 = vadd.xlane.f32.xlu0 %v111
    %v113 = vpop.xlane.xlu0 %112
    %v115 = vrot.slane %v113, 1
    %v118 = vrcp.pop %v113
    %v119 = vmul.f32 %v95, %v118
    %v120 = vrcp.pop %v115
    %v121 = vmul.f32 %v104, %v120
    %v122 = vld [vmem:[#allocation7] sm:$0xff]
    %v123 = vld [vmem:[#allocation7 + $0x8] sm:$0xff]
    %v124 = vld [vmem:[#allocation7 + $0x10] sm:$0xff]
    %v125 = vld [vmem:[#allocation7 + $0x18] sm:$0xff]
    %v126 = vld [vmem:[#allocation7 + $0x20] sm:$0xff]
    %v127 = vld [vmem:[#allocation7 + $0x28] sm:$0xff]
    %v128 = vld [vmem:[#allocation7 + $0x30] sm:$0xff]
    %v129 = vld [vmem:[#allocation7 + $0x38] sm:$0xff]
    %v130 = vld [vmem:[%s3] sm:$0x1]
    %v132 = vlaneseq
    %v133 = vshrl.u32 %v132, 7
    %v134 = vsub.s32 0, %v133
    %v135 = vrot.slane %v130, %v134
    %v139 = vrot.slane %v121, 7
    %v140 = vsel %vm107, %v139, %v119
    %v141 = vsel %vm86, %v140, 0
    %143 = vmatprep.subr.mxu0 0.0
    %144 = vmatpush1.msra.mxu0 %v122
    %145 = vmatprep.subr.mxu0 0.0
    %146 = vmatpush1.msra.mxu0 %v123
    %147 = vmatprep.subr.mxu0 0.0
    %148 = vmatpush1.msra.mxu0 %v124
    %149 = vmatprep.subr.mxu0 0.0
    %150 = vmatpush1.msra.mxu0 %v125
    %151 = vmatprep.subr.mxu0 0.0
    %152 = vmatpush1.msra.mxu0 %v126
    %153 = vmatprep.subr.mxu0 0.0
    %154 = vmatpush1.msra.mxu0 %v127
    %155 = vmatprep.subr.mxu0 0.0
    %156 = vmatpush1.msra.mxu0 %v128
    %157 = vmatprep.subr.mxu0 0.0
    %158 = vmatpush1.msra.mxu0 %v129
    %159 = vmatprep.subr.mxu0 0.0
    %160 = vmatpush1.msra.mxu0 0.0
    %161 = vmatprep.subr.mxu0 0.0
    %162 = vmatpush1.msra.mxu0 0.0
    %163 = vmatprep.subr.mxu0 0.0
    %164 = vmatpush1.msra.mxu0 0.0
    %165 = vmatprep.subr.mxu0 0.0
    %166 = vmatpush1.msra.mxu0 0.0
    %167 = vmatprep.subr.mxu0 0.0
    %168 = vmatpush1.msra.mxu0 0.0
    %169 = vmatprep.subr.mxu0 0.0
    %170 = vmatpush1.msra.mxu0 0.0
    %171 = vmatprep.subr.mxu0 0.0
    %172 = vmatpush1.msra.mxu0 0.0
    %173 = vmatprep.subr.mxu0 0.0
    %174 = vmatpush1.msra.mxu0 0.0
    %175 = vmatprep.subr.mxu0 0.0
    %176 = vmatpush1.msra.mxu0 0.0
    %177 = vmatprep.subr.mxu0 0.0
    %178 = vmatpush1.msra.mxu0 0.0
    %179 = vmatprep.subr.mxu0 0.0
    %180 = vmatpush1.msra.mxu0 0.0
    %181 = vmatprep.subr.mxu0 0.0
    %182 = vmatpush1.msra.mxu0 0.0
    %183 = vmatprep.subr.mxu0 0.0
    %184 = vmatpush1.msra.mxu0 0.0
    %185 = vmatprep.subr.mxu0 0.0
    %186 = vmatpush1.msra.mxu0 0.0
    %187 = vmatprep.subr.mxu0 0.0
    %188 = vmatpush1.msra.mxu0 0.0
    %189 = vmatprep.subr.mxu0 0.0
    %190 = vmatpush1.msra.mxu0 0.0
    %191 = vmatprep.subr.mxu0 0.0
    %192 = vmatpush1.msra.mxu0 0.0
    %193 = vmatprep.subr.mxu0 0.0
    %194 = vmatpush1.msra.mxu0 0.0
    %195 = vmatprep.subr.mxu0 0.0
    %196 = vmatpush1.msra.mxu0 0.0
    %197 = vmatprep.subr.mxu0 0.0
    %198 = vmatpush1.msra.mxu0 0.0
    %199 = vmatprep.subr.mxu0 0.0
    %200 = vmatpush1.msra.mxu0 0.0
    %201 = vmatprep.subr.mxu0 0.0
    %202 = vmatpush1.msra.mxu0 0.0
    %203 = vmatprep.subr.mxu0 0.0
    %204 = vmatpush1.msra.mxu0 0.0
    %205 = vmatprep.subr.mxu0 0.0
    %206 = vmatpush1.msra.mxu0 0.0
    %207 = vmatprep.mubr.f32.mxu0 0.0
    %208 = vmatmul.mubr.f32.gmra.mrb[0].mxu0 %v141
    %v209 = vpop.f32.mrb[0].mxu0
    %v210 = vadd.f32 %v135, %v209
    %v211 = vpop.f32.mrb[0].mxu0
    %212 = vdwg.mxu0
    %v213 = vmax.f32 %v210, -1.0
    %v214 = vmin.f32 %v213, 1.0
    %215 = vst.msk [vmem:[#allocation10] sm:$0x3] %vm110, %v214
    %v216 = vld [vmem:[#allocation5] sm:$0xff]
    %v217 = vld [vmem:[#allocation5 + $0x8] sm:$0xff]
    %v218 = vld [vmem:[#allocation5 + $0x10] sm:$0xff]
    %v219 = vld [vmem:[#allocation5 + $0x18] sm:$0xff]
    %v220 = vsel %vm86, %v216, -inf
    %v221 = vsel %vm86, %v217, -inf
    %v222 = vmax.f32 %v220, %v221
    %v223 = vrot.slane %v222, 4
    %v224 = vmax.f32 %v222, %v223
    %v225 = vrot.slane %v224, 2
    %v226 = vmax.f32 %v224, %v225
    %v227 = vrot.slane %v226, 1
    %v228 = vmax.f32 %v226, %v227
    %v229 = vsel %vm86, %v218, -inf
    %v230 = vsel %vm86, %v219, -inf
    %v231 = vmax.f32 %v229, %v230
    %v232 = vrot.slane %v231, 4
    %v233 = vmax.f32 %v231, %v232
    %v234 = vrot.slane %v233, 2
    %v235 = vmax.f32 %v233, %v234
    %v236 = vrot.slane %v235, 1
    %v237 = vmax.f32 %v235, %v236
    %v240 = vsel %vm107, %v237, %v228
    %v242 = vsel %vm110, %v240, 0.0
    %243 = vadd.xlane.f32.xlu0 %v242
    %v244 = vpop.xlane.xlu0 %243
    %v246 = vrot.slane %v244, 1
    %v249 = vrcp.pop %v244
    %v250 = vmul.f32 %v228, %v249
    %v251 = vrcp.pop %v246
    %v252 = vmul.f32 %v237, %v251
    %v253 = vld [vmem:[#allocation8] sm:$0xff]
    %v254 = vld [vmem:[#allocation8 + $0x8] sm:$0xff]
    %v255 = vld [vmem:[#allocation8 + $0x10] sm:$0xff]
    %v256 = vld [vmem:[#allocation8 + $0x18] sm:$0xff]
    %v257 = vld [vmem:[#allocation8 + $0x20] sm:$0xff]
    %v258 = vld [vmem:[#allocation8 + $0x28] sm:$0xff]
    %v259 = vld [vmem:[#allocation8 + $0x30] sm:$0xff]
    %v260 = vld [vmem:[#allocation8 + $0x38] sm:$0xff]
    %v261 = vld [vmem:[%s5] sm:$0x1]
    %v263 = vlaneseq
    %v264 = vshrl.u32 %v263, 7
    %v265 = vsub.s32 0, %v264
    %v266 = vrot.slane %v261, %v265
    %v270 = vrot.slane %v252, 7
    %v271 = vsel %vm107, %v270, %v250
    %v272 = vsel %vm86, %v271, 0
    %274 = vmatprep.subr.mxu0 0.0
    %275 = vmatpush1.msra.mxu0 %v253
    %276 = vmatprep.subr.mxu0 0.0
    %277 = vmatpush1.msra.mxu0 %v254
    %278 = vmatprep.subr.mxu0 0.0
    %279 = vmatpush1.msra.mxu0 %v255
    %280 = vmatprep.subr.mxu0 0.0
    %281 = vmatpush1.msra.mxu0 %v256
    %282 = vmatprep.subr.mxu0 0.0
    %283 = vmatpush1.msra.mxu0 %v257
    %284 = vmatprep.subr.mxu0 0.0
    %285 = vmatpush1.msra.mxu0 %v258
    %286 = vmatprep.subr.mxu0 0.0
    %287 = vmatpush1.msra.mxu0 %v259
    %288 = vmatprep.subr.mxu0 0.0
    %289 = vmatpush1.msra.mxu0 %v260
    %290 = vmatprep.subr.mxu0 0.0
    %291 = vmatpush1.msra.mxu0 0.0
    %292 = vmatprep.subr.mxu0 0.0
    %293 = vmatpush1.msra.mxu0 0.0
    %294 = vmatprep.subr.mxu0 0.0
    %295 = vmatpush1.msra.mxu0 0.0
    %296 = vmatprep.subr.mxu0 0.0
    %297 = vmatpush1.msra.mxu0 0.0
    %298 = vmatprep.subr.mxu0 0.0
    %299 = vmatpush1.msra.mxu0 0.0
    %300 = vmatprep.subr.mxu0 0.0
    %301 = vmatpush1.msra.mxu0 0.0
    %302 = vmatprep.subr.mxu0 0.0
    %303 = vmatpush1.msra.mxu0 0.0
    %304 = vmatprep.subr.mxu0 0.0
    %305 = vmatpush1.msra.mxu0 0.0
    %306 = vmatprep.subr.mxu0 0.0
    %307 = vmatpush1.msra.mxu0 0.0
    %308 = vmatprep.subr.mxu0 0.0
    %309 = vmatpush1.msra.mxu0 0.0
    %310 = vmatprep.subr.mxu0 0.0
    %311 = vmatpush1.msra.mxu0 0.0
    %312 = vmatprep.subr.mxu0 0.0
    %313 = vmatpush1.msra.mxu0 0.0
    %314 = vmatprep.subr.mxu0 0.0
    %315 = vmatpush1.msra.mxu0 0.0
    %316 = vmatprep.subr.mxu0 0.0
    %317 = vmatpush1.msra.mxu0 0.0
    %318 = vmatprep.subr.mxu0 0.0
    %319 = vmatpush1.msra.mxu0 0.0
    %320 = vmatprep.subr.mxu0 0.0
    %321 = vmatpush1.msra.mxu0 0.0
    %322 = vmatprep.subr.mxu0 0.0
    %323 = vmatpush1.msra.mxu0 0.0
    %324 = vmatprep.subr.mxu0 0.0
    %325 = vmatpush1.msra.mxu0 0.0
    %326 = vmatprep.subr.mxu0 0.0
    %327 = vmatpush1.msra.mxu0 0.0
    %328 = vmatprep.subr.mxu0 0.0
    %329 = vmatpush1.msra.mxu0 0.0
    %330 = vmatprep.subr.mxu0 0.0
    %331 = vmatpush1.msra.mxu0 0.0
    %332 = vmatprep.subr.mxu0 0.0
    %333 = vmatpush1.msra.mxu0 0.0
    %334 = vmatprep.subr.mxu0 0.0
    %335 = vmatpush1.msra.mxu0 0.0
    %336 = vmatprep.subr.mxu0 0.0
    %337 = vmatpush1.msra.mxu0 0.0
    %338 = vmatprep.mubr.f32.mxu0 0.0
    %339 = vmatmul.mubr.f32.gmra.mrb[0].mxu0 %v272
    %v340 = vpop.f32.mrb[0].mxu0
    %v341 = vadd.f32 %v266, %v340
    %v342 = vpop.f32.mrb[0].mxu0
    %343 = vdwg.mxu0
    %v344 = vmax.f32 %v341, -1.0
    %v345 = vmin.f32 %v344, 1.0
    %346 = vst.msk [vmem:[#allocation11] sm:$0x3] %vm110, %v345
    // Predicated region
    $region42: #{tpu_custom_call.1} parent=1 // pred_check
      _
    $region43: #{tpu_custom_call.1} parent=1 // pred_check_branch
      %348 = sbr.rel (0) target = $region45
    $region44: #{tpu_custom_call.1} parent=1 // pred_region
      %s350 = ssub.s32 32, 32
      %351 = vsyncadd [#allocation4], %s350
      %s353 = sshll.u32 [#allocation10], 4
      %s354 = int_to_ptr.vmem [resolvable:$true] %s353
      %356 = dma.vmem_to_hbm [thread:$0]  %s354, 32, %s6, [#allocation4]
    $region45: #{tpu_custom_call.1} parent=1 // pred_fallthru
      _
    // Predicated region
    $region46: #{tpu_custom_call.1} parent=1 // pred_check
      _
    $region47: #{tpu_custom_call.1} parent=1 // pred_check_branch
      %358 = sbr.rel (0) target = $region49
    $region48: #{tpu_custom_call.1} parent=1 // pred_region
      %s360 = ssub.s32 32, 32
      %361 = vsyncadd [#allocation12], %s360
      %s363 = sshll.u32 [#allocation11], 4
      %s364 = int_to_ptr.vmem [resolvable:$true] %s363
      %366 = dma.vmem_to_hbm [thread:$0]  %s364, 32, %s7, [#allocation12]
    $region49: #{tpu_custom_call.1} parent=1 // pred_fallthru
      _
    // Predicated region
    $region50: #{tpu_custom_call.1} parent=1 // pred_check
      _
    $region51: #{tpu_custom_call.1} parent=1 // pred_check_branch
      %368 = sbr.rel (0) target = $region53
    $region52: #{tpu_custom_call.1} parent=1 // pred_region
      %369 = dma.done [#allocation4], 32
    $region53: #{tpu_custom_call.1} parent=1 // pred_fallthru
      _
    // Predicated region
    $region54: #{tpu_custom_call.1} parent=1 // pred_check
      _
    $region55: #{tpu_custom_call.1} parent=1 // pred_check_branch
      %371 = sbr.rel (0) target = $region57
    $region56: #{tpu_custom_call.1} parent=1 // pred_region
      %372 = dma.done [#allocation12], 32
    $region57: #{tpu_custom_call.1} parent=1 // pred_fallthru
      _
    %373 = vsyncpa [#allocation3], 1
    %374 = vsyncpa [#allocation6], 1
    %375 = vsyncpa [#allocation9], 1
    %376 = vsyncpa [#allocation4], 1
    %377 = vsyncpa [#allocation12], 1

</llo_original>
